<compile_context>
chip_gen: v6e
topology: v6e:2x2x1
jax: 0.10.0
libtpu: 0.0.40
codegen_flags: <defaults>
</compile_context>

<pallas_src>
import math

import jax
import jax.numpy as jnp
import numpy as np
from jax.experimental import pallas as pl
from jax.experimental.pallas import tpu as pltpu


def _get_pad(size: int, multiple: int):
    new_size = math.ceil(size / multiple) * multiple
    pad = new_size - size
    left = pad // 2
    return left, pad - left


def _round_up(a: int, b: int) -> int:
    return -(-a // b) * b


def _vmem_capacity_bytes() -> int:
    try:
        return int(pltpu.get_tpu_info().vmem_capacity_bytes)
    except Exception:
        return 64 * 1024 * 1024  # conservative (v7x-sized) fallback


def _pick_block_rows(nc: int, in_lanes: int, out_lanes: int, itemsize: int,
                     sub: int, budget_bytes: int) -> int:
    """Channel-rows per block.

    Constraints: multiple of the dtype sublane tile `sub` (or == nc), padded
    double-buffered (in + out) footprint within `budget_bytes`, and >= 4 grid
    steps when nc is large enough (balanced megacore split + pipelining).
    """
    per_group = 2 * sub * (in_lanes + out_lanes) * itemsize  # `sub` rows, 2x buffered
    max_groups_vmem = max(1, budget_bytes // per_group)
    groups_total = -(-nc // sub)
    target_steps = 4 if groups_total >= 4 else 1
    groups_per_block = max(1, min(max_groups_vmem, groups_total // target_steps))
    rows = groups_per_block * sub
    if rows >= nc:
        rows = nc  # single block covering the whole array (== full dim, allowed)
    return rows


def center_padding(x: jax.Array, multiple: int) -> jax.Array:
    """Pallas implementation of CenterPadding.forward for 4-D NCHW inputs."""
    if x.ndim != 4:
        # TODO(synk): the PyTorch module pads every dim beyond the first two;
        # only the standard 4-D NCHW case (pad H and W) is implemented here.
        raise NotImplementedError("center_padding: only 4-D NCHW inputs supported")

    N, C, H, W = x.shape
    ph_l, ph_r = _get_pad(H, multiple)
    pw_l, pw_r = _get_pad(W, multiple)
    Hn = H + ph_l + ph_r
    Wn = W + pw_l + pw_r

    # Nothing to pad: the module is an identity.
    if Hn == H and Wn == W:
        return x

    NC = N * C
    itemsize = jnp.dtype(x.dtype).itemsize
    sub = max(8, 32 // itemsize)            # sublane tile: 8 f32 / 16 bf16 / 32 int8
    in_lanes = _round_up(H * W, 128)        # padded lane extent of the input block
    out_lanes = _round_up(Hn * Wn, 128)     # padded lane extent of the output block

    phys = _vmem_capacity_bytes()
    budget = max(4 << 20, min(int(phys * 0.55), phys - (16 << 20)))

    c_blk = _pick_block_rows(NC, in_lanes, out_lanes, itemsize, sub, budget)
    steps = pl.cdiv(NC, c_blk)

    # Tile-padded, double-buffered VMEM footprint of the chosen blocks.
    rows_pad = _round_up(c_blk, sub)
    footprint = 2 * rows_pad * (in_lanes + out_lanes) * itemsize
    vmem_limit = int(min(phys * 0.9, max(footprint + (4 << 20), 32 << 20)))

    # Free metadata reshape on contiguous NCHW: fold N*C, flatten H*W.
    x2 = x.reshape(NC, H * W)

    def kernel(x_ref, o_ref):
        # One dense, lane-wide zero-fill of the whole block (mostly unmasked vst),
        # then copy each input row into its centered slot of the flat plane.
        o_ref[...] = jnp.zeros(o_ref.shape, o_ref.dtype)
        if H <= 128:
            # Static offsets -> fully static masks, best codegen for typical maps.
            for r in range(H):
                dst = (ph_l + r) * Wn + pw_l
                o_ref[:, dst:dst + W] = x_ref[:, r * W:(r + 1) * W]
        else:
            # Keep code size bounded for very tall planes.
            def body(r, carry):
                dst = (ph_l + r) * Wn + pw_l
                o_ref[:, pl.ds(dst, W)] = x_ref[:, pl.ds(r * W, W)]
                return carry
            jax.lax.fori_loop(0, H, body, 0)

    in_bytes = NC * H * W * itemsize
    out_bytes = NC * Hn * Wn * itemsize

    out2 = pl.pallas_call(
        kernel,
        out_shape=jax.ShapeDtypeStruct((NC, Hn * Wn), x.dtype),
        grid=(steps,),
        in_specs=[pl.BlockSpec((c_blk, H * W), lambda i: (i, 0))],
        out_specs=pl.BlockSpec((c_blk, Hn * Wn), lambda i: (i, 0)),
        compiler_params=pltpu.CompilerParams(
            dimension_semantics=("parallel",),
            vmem_limit_bytes=vmem_limit,
        ),
        cost_estimate=pl.CostEstimate(
            flops=0, transcendentals=0, bytes_accessed=in_bytes + out_bytes),
    )(x2)

    return out2.reshape(N, C, Hn, Wn)


def _reference(x, multiple):
    ph_l, ph_r = _get_pad(x.shape[2], multiple)
    pw_l, pw_r = _get_pad(x.shape[3], multiple)
    return jnp.pad(x, ((0, 0), (0, 0), (ph_l, ph_r), (pw_l, pw_r)))


if __name__ == "__main__":
    # CenterPadding(multiple=14), the value DINOv2-style backbones use.
    multiple = 14
    key = jax.random.PRNGKey(0)

    # Primary check: the canonical small shape.
    x = jax.random.normal(key, (2, 4, 16, 16), dtype=jnp.float32)
    out = jax.block_until_ready(center_padding(x, multiple))
    np.testing.assert_allclose(np.asarray(out), np.asarray(_reference(x, multiple)),
                               rtol=0, atol=0)
    assert out.shape == (2, 4, 28, 28)

    # Secondary check: multi-step grid with a ragged last block and asymmetric pads.
    x2 = jax.random.normal(jax.random.PRNGKey(0), (3, 12, 10, 17), dtype=jnp.float32)
    out2 = jax.block_until_ready(center_padding(x2, multiple))
    np.testing.assert_allclose(np.asarray(out2), np.asarray(_reference(x2, multiple)),
                               rtol=0, atol=0)
    assert out2.shape == (3, 12, 14, 28)

    print("KERNEL_OK")
</pallas_src>

<mosaic_0001>
module attributes {stable_mosaic.version = 11 : i64} {
  func.func @kernel(%arg0: i32, %arg1: memref<8x256xf32, #tpu.memory_space<vmem>>, %arg2: memref<8x784xf32, #tpu.memory_space<vmem>>) attributes {dimension_semantics = [#tpu.dimension_semantics<parallel>], iteration_bounds = array<i64: 1>, scalar_prefetch = 0 : i64, scratch_operands = 0 : i64, tpu.core_type = #tpu.core_type<tc>, window_params = [{transform_indices = @transform_0, window_bounds = array<i64: 8, 256>}, {transform_indices = @transform_1, window_bounds = array<i64: 8, 784>}]} {
    %cst = arith.constant 0.000000e+00 : f32
    %0 = vector.broadcast %cst : f32 to vector<8x784xf32>
    %c0 = arith.constant 0 : index
    %c0_0 = arith.constant 0 : index
    %1 = vector.load %arg2[%c0, %c0_0] : memref<8x784xf32, #tpu.memory_space<vmem>>, vector<8x784xf32>
    tpu.vector_store %arg2[%c0, %c0_0], %0 {strides = array<i32>} : memref<8x784xf32, #tpu.memory_space<vmem>>, vector<8x784xf32>,
    %c0_1 = arith.constant 0 : index
    %c0_2 = arith.constant 0 : index
    %2 = vector.load %arg1[%c0_1, %c0_2] : memref<8x256xf32, #tpu.memory_space<vmem>>, vector<8x16xf32>
    %c0_3 = arith.constant 0 : index
    %c174 = arith.constant 174 : index
    %3 = vector.load %arg2[%c0_3, %c174] : memref<8x784xf32, #tpu.memory_space<vmem>>, vector<8x16xf32>
    tpu.vector_store %arg2[%c0_3, %c174], %2 {strides = array<i32>} : memref<8x784xf32, #tpu.memory_space<vmem>>, vector<8x16xf32>,
    %c0_4 = arith.constant 0 : index
    %c16 = arith.constant 16 : index
    %4 = vector.load %arg1[%c0_4, %c16] : memref<8x256xf32, #tpu.memory_space<vmem>>, vector<8x16xf32>
    %c0_5 = arith.constant 0 : index
    %c202 = arith.constant 202 : index
    %5 = vector.load %arg2[%c0_5, %c202] : memref<8x784xf32, #tpu.memory_space<vmem>>, vector<8x16xf32>
    tpu.vector_store %arg2[%c0_5, %c202], %4 {strides = array<i32>} : memref<8x784xf32, #tpu.memory_space<vmem>>, vector<8x16xf32>,
    %c0_6 = arith.constant 0 : index
    %c32 = arith.constant 32 : index
    %6 = vector.load %arg1[%c0_6, %c32] : memref<8x256xf32, #tpu.memory_space<vmem>>, vector<8x16xf32>
    %c0_7 = arith.constant 0 : index
    %c230 = arith.constant 230 : index
    %7 = vector.load %arg2[%c0_7, %c230] : memref<8x784xf32, #tpu.memory_space<vmem>>, vector<8x16xf32>
    tpu.vector_store %arg2[%c0_7, %c230], %6 {strides = array<i32>} : memref<8x784xf32, #tpu.memory_space<vmem>>, vector<8x16xf32>,
    %c0_8 = arith.constant 0 : index
    %c48 = arith.constant 48 : index
    %8 = vector.load %arg1[%c0_8, %c48] : memref<8x256xf32, #tpu.memory_space<vmem>>, vector<8x16xf32>
    %c0_9 = arith.constant 0 : index
    %c258 = arith.constant 258 : index
    %9 = vector.load %arg2[%c0_9, %c258] : memref<8x784xf32, #tpu.memory_space<vmem>>, vector<8x16xf32>
    tpu.vector_store %arg2[%c0_9, %c258], %8 {strides = array<i32>} : memref<8x784xf32, #tpu.memory_space<vmem>>, vector<8x16xf32>,
    %c0_10 = arith.constant 0 : index
    %c64 = arith.constant 64 : index
    %10 = vector.load %arg1[%c0_10, %c64] : memref<8x256xf32, #tpu.memory_space<vmem>>, vector<8x16xf32>
    %c0_11 = arith.constant 0 : index
    %c286 = arith.constant 286 : index
    %11 = vector.load %arg2[%c0_11, %c286] : memref<8x784xf32, #tpu.memory_space<vmem>>, vector<8x16xf32>
    tpu.vector_store %arg2[%c0_11, %c286], %10 {strides = array<i32>} : memref<8x784xf32, #tpu.memory_space<vmem>>, vector<8x16xf32>,
    %c0_12 = arith.constant 0 : index
    %c80 = arith.constant 80 : index
    %12 = vector.load %arg1[%c0_12, %c80] : memref<8x256xf32, #tpu.memory_space<vmem>>, vector<8x16xf32>
    %c0_13 = arith.constant 0 : index
    %c314 = arith.constant 314 : index
    %13 = vector.load %arg2[%c0_13, %c314] : memref<8x784xf32, #tpu.memory_space<vmem>>, vector<8x16xf32>
    tpu.vector_store %arg2[%c0_13, %c314], %12 {strides = array<i32>} : memref<8x784xf32, #tpu.memory_space<vmem>>, vector<8x16xf32>,
    %c0_14 = arith.constant 0 : index
    %c96 = arith.constant 96 : index
    %14 = vector.load %arg1[%c0_14, %c96] : memref<8x256xf32, #tpu.memory_space<vmem>>, vector<8x16xf32>
    %c0_15 = arith.constant 0 : index
    %c342 = arith.constant 342 : index
    %15 = vector.load %arg2[%c0_15, %c342] : memref<8x784xf32, #tpu.memory_space<vmem>>, vector<8x16xf32>
    tpu.vector_store %arg2[%c0_15, %c342], %14 {strides = array<i32>} : memref<8x784xf32, #tpu.memory_space<vmem>>, vector<8x16xf32>,
    %c0_16 = arith.constant 0 : index
    %c112 = arith.constant 112 : index
    %16 = vector.load %arg1[%c0_16, %c112] : memref<8x256xf32, #tpu.memory_space<vmem>>, vector<8x16xf32>
    %c0_17 = arith.constant 0 : index
    %c370 = arith.constant 370 : index
    %17 = vector.load %arg2[%c0_17, %c370] : memref<8x784xf32, #tpu.memory_space<vmem>>, vector<8x16xf32>
    tpu.vector_store %arg2[%c0_17, %c370], %16 {strides = array<i32>} : memref<8x784xf32, #tpu.memory_space<vmem>>, vector<8x16xf32>,
    %c0_18 = arith.constant 0 : index
    %c128 = arith.constant 128 : index
    %18 = vector.load %arg1[%c0_18, %c128] : memref<8x256xf32, #tpu.memory_space<vmem>>, vector<8x16xf32>
    %c0_19 = arith.constant 0 : index
    %c398 = arith.constant 398 : index
    %19 = vector.load %arg2[%c0_19, %c398] : memref<8x784xf32, #tpu.memory_space<vmem>>, vector<8x16xf32>
    tpu.vector_store %arg2[%c0_19, %c398], %18 {strides = array<i32>} : memref<8x784xf32, #tpu.memory_space<vmem>>, vector<8x16xf32>,
    %c0_20 = arith.constant 0 : index
    %c144 = arith.constant 144 : index
    %20 = vector.load %arg1[%c0_20, %c144] : memref<8x256xf32, #tpu.memory_space<vmem>>, vector<8x16xf32>
    %c0_21 = arith.constant 0 : index
    %c426 = arith.constant 426 : index
    %21 = vector.load %arg2[%c0_21, %c426] : memref<8x784xf32, #tpu.memory_space<vmem>>, vector<8x16xf32>
    tpu.vector_store %arg2[%c0_21, %c426], %20 {strides = array<i32>} : memref<8x784xf32, #tpu.memory_space<vmem>>, vector<8x16xf32>,
    %c0_22 = arith.constant 0 : index
    %c160 = arith.constant 160 : index
    %22 = vector.load %arg1[%c0_22, %c160] : memref<8x256xf32, #tpu.memory_space<vmem>>, vector<8x16xf32>
    %c0_23 = arith.constant 0 : index
    %c454 = arith.constant 454 : index
    %23 = vector.load %arg2[%c0_23, %c454] : memref<8x784xf32, #tpu.memory_space<vmem>>, vector<8x16xf32>
    tpu.vector_store %arg2[%c0_23, %c454], %22 {strides = array<i32>} : memref<8x784xf32, #tpu.memory_space<vmem>>, vector<8x16xf32>,
    %c0_24 = arith.constant 0 : index
    %c176 = arith.constant 176 : index
    %24 = vector.load %arg1[%c0_24, %c176] : memref<8x256xf32, #tpu.memory_space<vmem>>, vector<8x16xf32>
    %c0_25 = arith.constant 0 : index
    %c482 = arith.constant 482 : index
    %25 = vector.load %arg2[%c0_25, %c482] : memref<8x784xf32, #tpu.memory_space<vmem>>, vector<8x16xf32>
    tpu.vector_store %arg2[%c0_25, %c482], %24 {strides = array<i32>} : memref<8x784xf32, #tpu.memory_space<vmem>>, vector<8x16xf32>,
    %c0_26 = arith.constant 0 : index
    %c192 = arith.constant 192 : index
    %26 = vector.load %arg1[%c0_26, %c192] : memref<8x256xf32, #tpu.memory_space<vmem>>, vector<8x16xf32>
    %c0_27 = arith.constant 0 : index
    %c510 = arith.constant 510 : index
    %27 = vector.load %arg2[%c0_27, %c510] : memref<8x784xf32, #tpu.memory_space<vmem>>, vector<8x16xf32>
    tpu.vector_store %arg2[%c0_27, %c510], %26 {strides = array<i32>} : memref<8x784xf32, #tpu.memory_space<vmem>>, vector<8x16xf32>,
    %c0_28 = arith.constant 0 : index
    %c208 = arith.constant 208 : index
    %28 = vector.load %arg1[%c0_28, %c208] : memref<8x256xf32, #tpu.memory_space<vmem>>, vector<8x16xf32>
    %c0_29 = arith.constant 0 : index
    %c538 = arith.constant 538 : index
    %29 = vector.load %arg2[%c0_29, %c538] : memref<8x784xf32, #tpu.memory_space<vmem>>, vector<8x16xf32>
    tpu.vector_store %arg2[%c0_29, %c538], %28 {strides = array<i32>} : memref<8x784xf32, #tpu.memory_space<vmem>>, vector<8x16xf32>,
    %c0_30 = arith.constant 0 : index
    %c224 = arith.constant 224 : index
    %30 = vector.load %arg1[%c0_30, %c224] : memref<8x256xf32, #tpu.memory_space<vmem>>, vector<8x16xf32>
    %c0_31 = arith.constant 0 : index
    %c566 = arith.constant 566 : index
    %31 = vector.load %arg2[%c0_31, %c566] : memref<8x784xf32, #tpu.memory_space<vmem>>, vector<8x16xf32>
    tpu.vector_store %arg2[%c0_31, %c566], %30 {strides = array<i32>} : memref<8x784xf32, #tpu.memory_space<vmem>>, vector<8x16xf32>,
    %c0_32 = arith.constant 0 : index
    %c240 = arith.constant 240 : index
    %32 = vector.load %arg1[%c0_32, %c240] : memref<8x256xf32, #tpu.memory_space<vmem>>, vector<8x16xf32>
    %c0_33 = arith.constant 0 : index
    %c594 = arith.constant 594 : index
    %33 = vector.load %arg2[%c0_33, %c594] : memref<8x784xf32, #tpu.memory_space<vmem>>, vector<8x16xf32>
    tpu.vector_store %arg2[%c0_33, %c594], %32 {strides = array<i32>} : memref<8x784xf32, #tpu.memory_space<vmem>>, vector<8x16xf32>,
    return
  }
  func.func @transform_0(%arg0: i32) -> (i32, i32) {
    %c0_i32 = arith.constant 0 : i32
    %c0_i32_0 = arith.constant 0 : i32
    return %arg0, %c0_i32 : i32, i32
  }
  func.func @transform_1(%arg0: i32) -> (i32, i32) {
    %c0_i32 = arith.constant 0 : i32
    %c0_i32_0 = arith.constant 0 : i32
    return %arg0, %c0_i32 : i32, i32
  }
}

</mosaic_0001>

<llo_original>
// kernel: tpu_custom_call.1
$region0: #{tpu_custom_call.1}
  #allocation0 [shape = 'u32[]', space=smem, size = 0x4, offset = 0x4, fixed_abs, tag = 'smem constant byte address 0x4 - core index']
  #allocation1 [shape = 'u32[144,128]{1,0:T(1,128)}', space=vmem, size = 0x12000, scoped, tag = 'internal scratch']
  %s0 = inlined_call_operand.hbm [shape: f32[8,256], index: 0, kind: input, shape index: {}]
  %s1 = inlined_call_operand.hbm [shape: f32[8,784], index: 1, kind: output, shape index: {}]
  %s2 = sld [smem:[#allocation0]]
  $region18: #{tpu_custom_call.1} parent=0
    _
  %s4 = ssub.s32 1, %s2
  %s5 = scalar_select 0, %s4, %s2
  $region1: #{tpu_custom_call.1} parent=0
    #allocation2 [shape = 'u8[8192]{0}', space=vmem, size = 0x2000, scoped, tag = 'input window, operand 0, single buffered']
    #allocation3 [shape = 's32[1]{0}', space=sflag, size = 0x4, scoped, tag = 'scoped memory for tpu_custom_call.1']
    #allocation4 [shape = 's32[1]{0}', space=sflag, size = 0x4, scoped, tag = 'scoped memory for tpu_custom_call.1']
    #allocation5 [shape = 'u8[28672]{0}', space=vmem, size = 0x7000, scoped, tag = 'output window, operand 0, single buffered']
    %6 = vsyncpa [#allocation3], 0
    %7 = vsyncpa [#allocation4], 0
    // Predicated region
    $region2: #{tpu_custom_call.1} parent=1 // pred_check
      _
    $region3: #{tpu_custom_call.1} parent=1 // pred_check_branch
      %9 = sbr.rel (0) target = $region5
    $region4: #{tpu_custom_call.1} parent=1 // pred_region
      %s11 = ssub.s32 256, 256
      %12 = vsyncadd [#allocation3], %s11
      %s14 = sshll.u32 [#allocation2], 4
      %s15 = int_to_ptr.vmem [resolvable:$true] %s14
      %17 = dma.hbm_to_vmem [thread:$0]  %s0, 256, %s15, [#allocation3]
    $region5: #{tpu_custom_call.1} parent=1 // pred_fallthru
      _
    // Predicated region
    $region6: #{tpu_custom_call.1} parent=1 // pred_check
      _
    $region7: #{tpu_custom_call.1} parent=1 // pred_check_branch
      %19 = sbr.rel (0) target = $region9
    $region8: #{tpu_custom_call.1} parent=1 // pred_region
      %20 = dma.done [#allocation3], 256
    $region9: #{tpu_custom_call.1} parent=1 // pred_fallthru
      _
    %21 = vst [vmem:[#allocation5] sm:$0xff] 0.0
    %22 = vst [vmem:[#allocation5 + $0x8] sm:$0xff] 0.0
    %23 = vst [vmem:[#allocation5 + $0x10] sm:$0xff] 0.0
    %24 = vst [vmem:[#allocation5 + $0x18] sm:$0xff] 0.0
    %25 = vst [vmem:[#allocation5 + $0x20] sm:$0xff] 0.0
    %26 = vst [vmem:[#allocation5 + $0x28] sm:$0xff] 0.0
    %vm27 = vcmask 130048
    %28 = vst.msk [vmem:[#allocation5 + $0x30] sm:$0xff] %vm27, 0.0
    %v29 = vld [vmem:[#allocation2] sm:$0xff]
    %31 = vrot.lane.b32.xlu0 %v29, 46
    %v32 = vpop.permute.xlu0 %31
    %vm34 = vcmask 507248
    %35 = vst.msk [vmem:[#allocation5 + $0x8] sm:$0xff] %vm34, %v32
    %v36 = vld [vmem:[#allocation2] sm:$0xff]
    %38 = vrot.lane.b32.xlu0 %v36, 58
    %v39 = vpop.permute.xlu0 %38
    %vm41 = vcmask 736848
    %42 = vst.msk [vmem:[#allocation5 + $0x8] sm:$0xff] %vm41, %v39
    %v43 = vld [vmem:[#allocation2] sm:$0xff]
    %45 = vrot.lane.b32.xlu0 %v43, 70
    %v46 = vpop.permute.xlu0 %45
    %vm48 = vcmask 966448
    %49 = vst.msk [vmem:[#allocation5 + $0x8] sm:$0xff] %vm48, %v46
    %v50 = vld [vmem:[#allocation2] sm:$0xff]
    %52 = vrot.lane.b32.xlu0 %v50, 82
    %v53 = vpop.permute.xlu0 %52
    %vm55 = vcmask 146448
    %56 = vst.msk [vmem:[#allocation5 + $0x10] sm:$0xff] %vm55, %v53
    %v57 = vld [vmem:[#allocation2] sm:$0xff]
    %59 = vrot.lane.b32.xlu0 %v57, 94
    %v60 = vpop.permute.xlu0 %59
    %vm62 = vcmask 376048
    %63 = vst.msk [vmem:[#allocation5 + $0x10] sm:$0xff] %vm62, %v60
    %v64 = vld [vmem:[#allocation2] sm:$0xff]
    %66 = vrot.lane.b32.xlu0 %v64, 106
    %v67 = vpop.permute.xlu0 %66
    %vm69 = vcmask 605648
    %70 = vst.msk [vmem:[#allocation5 + $0x10] sm:$0xff] %vm69, %v67
    %v71 = vld [vmem:[#allocation2] sm:$0xff]
    %73 = vrot.lane.b32.xlu0 %v71, 118
    %v74 = vpop.permute.xlu0 %73
    %vm76 = vcmask 835248
    %77 = vst.msk [vmem:[#allocation5 + $0x10] sm:$0xff] %vm76, %v74
    %v78 = vld [vmem:[#allocation2] sm:$0xff]
    %80 = vrot.lane.b32.xlu0 %v78, 2
    %v81 = vpop.permute.xlu0 %80
    %vm83 = vcmask 1048464
    %84 = vst.msk [vmem:[#allocation5 + $0x10] sm:$0xff] %vm83, %v81
    %vm85 = vcmask 15360
    %86 = vst.msk [vmem:[#allocation5 + $0x18] sm:$0xff] %vm85, %v81
    %v87 = vld [vmem:[#allocation2 + $0x8] sm:$0xff]
    %89 = vrot.lane.b32.xlu0 %v87, 14
    %v90 = vpop.permute.xlu0 %89
    %vm92 = vcmask 244848
    %93 = vst.msk [vmem:[#allocation5 + $0x18] sm:$0xff] %vm92, %v90
    %v94 = vld [vmem:[#allocation2 + $0x8] sm:$0xff]
    %96 = vrot.lane.b32.xlu0 %v94, 26
    %v97 = vpop.permute.xlu0 %96
    %vm99 = vcmask 474448
    %100 = vst.msk [vmem:[#allocation5 + $0x18] sm:$0xff] %vm99, %v97
    %v101 = vld [vmem:[#allocation2 + $0x8] sm:$0xff]
    %103 = vrot.lane.b32.xlu0 %v101, 38
    %v104 = vpop.permute.xlu0 %103
    %vm106 = vcmask 704048
    %107 = vst.msk [vmem:[#allocation5 + $0x18] sm:$0xff] %vm106, %v104
    %v108 = vld [vmem:[#allocation2 + $0x8] sm:$0xff]
    %110 = vrot.lane.b32.xlu0 %v108, 50
    %v111 = vpop.permute.xlu0 %110
    %vm113 = vcmask 933648
    %114 = vst.msk [vmem:[#allocation5 + $0x18] sm:$0xff] %vm113, %v111
    %v115 = vld [vmem:[#allocation2 + $0x8] sm:$0xff]
    %117 = vrot.lane.b32.xlu0 %v115, 62
    %v118 = vpop.permute.xlu0 %117
    %vm120 = vcmask 1048560
    %121 = vst.msk [vmem:[#allocation5 + $0x18] sm:$0xff] %vm120, %v118
    %vm122 = vcmask 113664
    %123 = vst.msk [vmem:[#allocation5 + $0x20] sm:$0xff] %vm122, %v118
    %v124 = vld [vmem:[#allocation2 + $0x8] sm:$0xff]
    %126 = vrot.lane.b32.xlu0 %v124, 74
    %v127 = vpop.permute.xlu0 %126
    %vm129 = vcmask 343248
    %130 = vst.msk [vmem:[#allocation5 + $0x20] sm:$0xff] %vm129, %v127
    %v131 = vld [vmem:[#allocation2 + $0x8] sm:$0xff]
    %133 = vrot.lane.b32.xlu0 %v131, 86
    %v134 = vpop.permute.xlu0 %133
    %vm136 = vcmask 572848
    %137 = vst.msk [vmem:[#allocation5 + $0x20] sm:$0xff] %vm136, %v134
    %v138 = vld [vmem:[#allocation2 + $0x8] sm:$0xff]
    %140 = vrot.lane.b32.xlu0 %v138, 98
    %v141 = vpop.permute.xlu0 %140
    %vm143 = vcmask 802448
    %144 = vst.msk [vmem:[#allocation5 + $0x20] sm:$0xff] %vm143, %v141
    // Predicated region
    $region10: #{tpu_custom_call.1} parent=1 // pred_check
      _
    $region11: #{tpu_custom_call.1} parent=1 // pred_check_branch
      %146 = sbr.rel (0) target = $region13
    $region12: #{tpu_custom_call.1} parent=1 // pred_region
      %s148 = ssub.s32 896, 896
      %149 = vsyncadd [#allocation4], %s148
      %s151 = sshll.u32 [#allocation5], 4
      %s152 = int_to_ptr.vmem [resolvable:$true] %s151
      %154 = dma.vmem_to_hbm [thread:$0]  %s152, 896, %s1, [#allocation4]
    $region13: #{tpu_custom_call.1} parent=1 // pred_fallthru
      _
    // Predicated region
    $region14: #{tpu_custom_call.1} parent=1 // pred_check
      _
    $region15: #{tpu_custom_call.1} parent=1 // pred_check_branch
      %156 = sbr.rel (0) target = $region17
    $region16: #{tpu_custom_call.1} parent=1 // pred_region
      %157 = dma.done [#allocation4], 896
    $region17: #{tpu_custom_call.1} parent=1 // pred_fallthru
      _
    %158 = vsyncpa [#allocation3], 1
    %159 = vsyncpa [#allocation4], 1

</llo_original>
